<compile_context>
chip_gen: v7x
topology: tpu7x:2x2x1
jax: 0.10.0
libtpu: 0.0.40
codegen_flags: <defaults>
</compile_context>

<pallas_src>
import functools

import numpy as np
import jax
import jax.numpy as jnp
from jax.experimental import pallas as pl
from jax.experimental.pallas import tpu as pltpu

EMBED = 64            # embedding_size in the PyTorch module
NUM_FEATURES = 9      # ESOL (MoleculeNet) node feature count
TILE_TARGET = 512     # target adjacency row tile (review: >=512 for HBM roofline)
MP_ALIGN = 16         # per-graph window alignment (bf16 sublane pack is (16,128))
VMEM_LIMIT = 32 * 1024 * 1024   # generous; diag-strip buffers are ~1-2 MiB even at tm=512


def _round_up(x, m):
  return (x + m - 1) // m * m


# ---------------------------------------------------------------------------
# Kernel 1: one GCN layer on the block-diagonal adjacency strip
#   out_tile = tanh(adj_diag_tile @ (h_tile @ W) + b)
# Single "parallel" grid axis over row tiles; each tile touched exactly once.
# ---------------------------------------------------------------------------
def gcn_layer_kernel(adj_ref, h_ref, w_ref, b_ref, out_ref):
  # HW-first: tiny (tm, e_in) @ (e_in, e_out) matmul, f32 accumulation.
  hw = jnp.dot(h_ref[...], w_ref[...], preferred_element_type=jnp.float32)
  # Diagonal adjacency tile @ HW (bf16 operands, f32 accumulation).
  z = jnp.dot(adj_ref[...], hw.astype(jnp.bfloat16),
              preferred_element_type=jnp.float32)
  out_ref[...] = jnp.tanh(z + b_ref[...]).astype(out_ref.dtype)


def gcn_layer(adj_diag, h, w, b, *, tm):
  """adj_diag: (npad, tm) bf16 strip of diagonal tiles; h: (npad, e_in) bf16."""
  npad, e_in = h.shape
  e_out = w.shape[1]
  assert npad % tm == 0 and adj_diag.shape == (npad, tm)

  return pl.pallas_call(
      gcn_layer_kernel,
      out_shape=jax.ShapeDtypeStruct((npad, e_out), jnp.bfloat16),
      grid_spec=pltpu.PrefetchScalarGridSpec(
          num_scalar_prefetch=0,
          grid=(npad // tm,),
          in_specs=[
              pl.BlockSpec((tm, tm), lambda i: (i, 0)),        # diag adjacency tile
              pl.BlockSpec((tm, e_in), lambda i: (i, 0)),      # H rows for this tile
              pl.BlockSpec((e_in, e_out), lambda i: (0, 0)),   # W (resident)
              pl.BlockSpec((1, e_out), lambda i: (0, 0)),      # bias (resident)
          ],
          out_specs=pl.BlockSpec((tm, e_out), lambda i: (i, 0)),
      ),
      compiler_params=pltpu.CompilerParams(
          dimension_semantics=("parallel",),
          vmem_limit_bytes=VMEM_LIMIT,
      ),
  )(adj_diag, h, w, b)


# ---------------------------------------------------------------------------
# Kernel 2: per-graph max/mean pooling + Linear head
# Graph g's nodes live in rows [g*mp, g*mp + cnt_g) of the padded layout, so the
# window is a plain block index -> automatic double-buffered pipelining and a
# safely "parallel" grid axis (2 TCs on v7x).
# ---------------------------------------------------------------------------
def pool_head_kernel(cnt_ref,                              # scalar prefetch (SMEM)
                     h_ref, wa_ref, wb_ref, bout_ref,      # inputs
                     out_ref, hidden_ref,                  # outputs
                     *, mp, embed):
  g = pl.program_id(0)
  cnt = cnt_ref[g]

  win = h_ref[...].astype(jnp.float32)                                # (mp, E)
  rows = jax.lax.broadcasted_iota(jnp.int32, (mp, 1), 0)
  valid = rows < cnt                                                  # non-empty graphs

  gmax = jnp.max(jnp.where(valid, win, jnp.float32(-1e30)),
                 axis=0, keepdims=True)                               # (1, E)
  gsum = jnp.sum(jnp.where(valid, win, jnp.float32(0.0)),
                 axis=0, keepdims=True)                               # (1, E)
  gmean = gsum * (1.0 / jnp.maximum(cnt, 1).astype(jnp.float32))      # (1, E)

  # 1-wide Linear head as VPU multiply + lane reduce (no MXU pass for N=1).
  val = jnp.sum(gmax * wa_ref[...] + gmean * wb_ref[...],
                axis=1, keepdims=True) + bout_ref[...]                # (1, 1)

  out_ref[...] = val.reshape(1, 1, 1)
  # hidden = [gmax | gmean] written via two slices (no lane-axis concatenate).
  hidden_ref[:, :, pl.ds(0, embed)] = gmax.reshape(1, 1, embed)
  hidden_ref[:, :, pl.ds(embed, embed)] = gmean.reshape(1, 1, embed)


def pool_and_head(h, counts, wout_a, wout_b, bout, *, num_graphs, mp):
  embed = wout_a.shape[1]
  kern = functools.partial(pool_head_kernel, mp=mp, embed=embed)

  out3, hid3 = pl.pallas_call(
      kern,
      out_shape=(
          jax.ShapeDtypeStruct((num_graphs, 1, 1), jnp.float32),
          jax.ShapeDtypeStruct((num_graphs, 1, 2 * embed), jnp.float32),
      ),
      grid_spec=pltpu.PrefetchScalarGridSpec(
          num_scalar_prefetch=1,
          grid=(num_graphs,),
          in_specs=[
              pl.BlockSpec((mp, embed), lambda g, cnts: (g, 0)),      # graph window
              pl.BlockSpec((1, embed), lambda g, cnts: (0, 0)),       # wout (max half)
              pl.BlockSpec((1, embed), lambda g, cnts: (0, 0)),       # wout (mean half)
              pl.BlockSpec((1, 1), lambda g, cnts: (0, 0)),           # bout
          ],
          out_specs=(
              pl.BlockSpec((1, 1, 1), lambda g, cnts: (g, 0, 0)),
              pl.BlockSpec((1, 1, 2 * embed), lambda g, cnts: (g, 0, 0)),
          ),
      ),
      compiler_params=pltpu.CompilerParams(
          dimension_semantics=("parallel",),
          vmem_limit_bytes=VMEM_LIMIT,
      ),
  )(counts, h, wout_a, wout_b, bout)

  return out3.reshape(num_graphs, 1), hid3.reshape(num_graphs, 2 * embed)


# ---------------------------------------------------------------------------
# Plain-JAX glue
# ---------------------------------------------------------------------------
def build_blockdiag_norm_adj(edge_index, batch_index, num_nodes, num_graphs,
                             mp, tm, npad):
  """Build the (npad, tm) strip of diagonal tiles of D^{-1/2}(A+I)D^{-1/2} in the
  per-graph padded node layout (graph g at rows [g*mp, g*mp+cnt_g)).  Only the
  diagonal tiles are ever materialized (adjacency is block-diagonal by
  construction since edges are intra-graph).  Matches PyG gcn_norm."""
  counts = jnp.bincount(batch_index, length=num_graphs).astype(jnp.int32)
  offs = (jnp.cumsum(counts) - counts).astype(jnp.int32)
  node_pid = (batch_index * mp
              + (jnp.arange(num_nodes, dtype=jnp.int32) - offs[batch_index]))

  src, dst = edge_index[0], edge_index[1]
  adj = jnp.zeros((npad, tm), jnp.float32)
  # A[target, source] += 1, stored at column (source_pid mod tm) of its row tile.
  adj = adj.at[node_pid[dst], node_pid[src] % tm].add(1.0)
  # Self loops for real nodes only (padded rows stay zero).
  adj = adj.at[node_pid, node_pid % tm].add(1.0)

  deg = jnp.sum(adj, axis=1)
  d_inv_sqrt = jnp.where(deg > 0, 1.0 / jnp.sqrt(deg), 0.0)

  nt = npad // tm
  a3 = adj.reshape(nt, tm, tm)
  d3 = d_inv_sqrt.reshape(nt, tm)
  a3 = a3 * d3[:, :, None] * d3[:, None, :]
  return a3.reshape(npad, tm), counts, node_pid


def init_params(key):
  """Deterministic glorot-ish init mirroring the module's parameter shapes.
  (conv1 exists in the module but is unused by forward(), so it is omitted.)"""
  def glorot(k, shape):
    fan_in, fan_out = shape
    lim = jnp.sqrt(6.0 / (fan_in + fan_out))
    return jax.random.uniform(k, shape, jnp.float32, -lim, lim)

  ks = jax.random.split(key, 8)
  return dict(
      w0=glorot(ks[0], (NUM_FEATURES, EMBED)), b0=jnp.zeros((1, EMBED), jnp.float32),
      w2=glorot(ks[1], (EMBED, EMBED)),        b2=jnp.zeros((1, EMBED), jnp.float32),
      w3=glorot(ks[2], (EMBED, EMBED)),        b3=jnp.zeros((1, EMBED), jnp.float32),
      wout=glorot(ks[3], (2 * EMBED, 1)),
      bout=jax.random.uniform(ks[4], (1, 1), jnp.float32, -0.08, 0.08),
  )


def gcn_forward(x, edge_index, batch_index, params, num_graphs,
                max_nodes_per_graph):
  """Forward pass.  batch_index must be sorted (PyG-style batching: graphs occupy
  contiguous node ranges); edges connect nodes within the same graph.
  NOTE: bf16 adjacency/activations with f32 MXU accumulation -> matches a f32
  PyTorch GCNConv to ~1e-2 relative tolerance (inference-grade)."""
  n = x.shape[0]
  mp = _round_up(max(max_nodes_per_graph, 1), MP_ALIGN)   # aligned per-graph window
  total = num_graphs * mp
  # Row tile: multiple of mp, as close to TILE_TARGET as possible, never larger
  # than the padded node count (no over-padding of tiny batches).
  tm = mp * max(1, min(max(TILE_TARGET // mp, 1), total // mp))
  npad = _round_up(total, tm)
  assert npad % mp == 0 and tm % mp == 0

  adj_diag, counts, node_pid = build_blockdiag_norm_adj(
      edge_index, batch_index, n, num_graphs, mp, tm, npad)
  adj_diag = adj_diag.astype(jnp.bfloat16)

  x_pad = jnp.zeros((npad, x.shape[1]), jnp.float32).at[node_pid].set(x)
  x_pad = x_pad.astype(jnp.bfloat16)

  w0 = params["w0"].astype(jnp.bfloat16)
  w2 = params["w2"].astype(jnp.bfloat16)
  w3 = params["w3"].astype(jnp.bfloat16)

  h = gcn_layer(adj_diag, x_pad, w0, params["b0"], tm=tm)   # initial_conv + tanh
  h = gcn_layer(adj_diag, h, w2, params["b2"], tm=tm)       # conv2 + tanh
  h = gcn_layer(adj_diag, h, w3, params["b3"], tm=tm)       # conv3 + tanh

  wout_a = params["wout"][:EMBED, 0].reshape(1, EMBED)   # weight for max-pool half
  wout_b = params["wout"][EMBED:, 0].reshape(1, EMBED)   # weight for mean-pool half

  return pool_and_head(h, counts, wout_a, wout_b, params["bout"],
                       num_graphs=num_graphs, mp=mp)


# ---------------------------------------------------------------------------
# Demo
# ---------------------------------------------------------------------------
if __name__ == "__main__":
  key = jax.random.PRNGKey(0)
  k_feat, k_param = jax.random.split(key, 2)

  num_graphs = 4
  nodes_per_graph = 8
  n = num_graphs * nodes_per_graph            # 32 nodes total

  # node features (N, F)
  x = jax.random.normal(k_feat, (n, NUM_FEATURES), jnp.float32)

  # deterministic random intra-graph edges: undirected, deduplicated, no self-loops
  rng = np.random.default_rng(0)
  pairs = []
  for g in range(num_graphs):
    lo = g * nodes_per_graph
    s = rng.integers(lo, lo + nodes_per_graph, size=12)
    d = rng.integers(lo, lo + nodes_per_graph, size=12)
    for a, b in zip(s, d):
      if a != b:
        pairs.append((int(a), int(b)))
        pairs.append((int(b), int(a)))
  pairs = np.unique(np.asarray(pairs, dtype=np.int32), axis=0)
  edge_index = jnp.asarray(pairs.T)

  batch_index = jnp.repeat(jnp.arange(num_graphs, dtype=jnp.int32), nodes_per_graph)

  params = init_params(k_param)

  out, hidden = gcn_forward(x, edge_index, batch_index, params,
                            num_graphs=num_graphs,
                            max_nodes_per_graph=nodes_per_graph)
  jax.block_until_ready((out, hidden))

  assert out.shape == (num_graphs, 1)
  assert hidden.shape == (num_graphs, 2 * EMBED)
  assert bool(jnp.all(jnp.isfinite(out))) and bool(jnp.all(jnp.isfinite(hidden)))
  print("KERNEL_OK")
</pallas_src>

<mosaic_0001>
module attributes {stable_mosaic.version = 11 : i64} {
  func.func @gcn_layer_kernel(%arg0: i32, %arg1: memref<64x64xbf16, #tpu.memory_space<vmem>>, %arg2: memref<64x9xbf16, #tpu.memory_space<vmem>>, %arg3: memref<9x64xbf16, #tpu.memory_space<vmem>>, %arg4: memref<1x64xf32, #tpu.memory_space<vmem>>, %arg5: memref<64x64xbf16, #tpu.memory_space<vmem>>) attributes {dimension_semantics = [#tpu.dimension_semantics<parallel>], iteration_bounds = array<i64: 1>, scalar_prefetch = 0 : i64, scratch_operands = 0 : i64, tpu.core_type = #tpu.core_type<tc>, window_params = [{transform_indices = @transform_0, window_bounds = array<i64: 64, 64>}, {transform_indices = @transform_1, window_bounds = array<i64: 64, 9>}, {pipeline_mode = #tpu.pipeline_mode<synchronous>, transform_indices = @transform_2, window_bounds = array<i64: 9, 64>}, {pipeline_mode = #tpu.pipeline_mode<synchronous>, transform_indices = @transform_3, window_bounds = array<i64: 1, 64>}, {transform_indices = @transform_4, window_bounds = array<i64: 64, 64>}]} {
    %c0 = arith.constant 0 : index
    %c0_0 = arith.constant 0 : index
    %0 = vector.load %arg2[%c0, %c0_0] : memref<64x9xbf16, #tpu.memory_space<vmem>>, vector<64x9xbf16>
    %c0_1 = arith.constant 0 : index
    %c0_2 = arith.constant 0 : index
    %1 = vector.load %arg3[%c0_1, %c0_2] : memref<9x64xbf16, #tpu.memory_space<vmem>>, vector<9x64xbf16>
    %cst = arith.constant dense<0.000000e+00> : vector<64x64xf32>
    %2 = tpu.matmul %0, %1, %cst {dimension_numbers = #tpu.dot_dimension_numbers<[1], [0], [0], [1], [0, 0, 1, 1], [], []>} : vector<64x9xbf16>, vector<9x64xbf16>, vector<64x64xf32> -> vector<64x64xf32>
    %c0_3 = arith.constant 0 : index
    %c0_4 = arith.constant 0 : index
    %3 = vector.load %arg1[%c0_3, %c0_4] : memref<64x64xbf16, #tpu.memory_space<vmem>>, vector<64x64xbf16>
    %4 = arith.truncf %2 : vector<64x64xf32> to vector<64x64xbf16>
    %cst_5 = arith.constant dense<0.000000e+00> : vector<64x64xf32>
    %5 = tpu.matmul %3, %4, %cst_5 {dimension_numbers = #tpu.dot_dimension_numbers<[1], [0], [0], [1], [0, 0, 1, 1], [], []>} : vector<64x64xbf16>, vector<64x64xbf16>, vector<64x64xf32> -> vector<64x64xf32>
    %c0_6 = arith.constant 0 : index
    %c0_7 = arith.constant 0 : index
    %6 = vector.load %arg4[%c0_6, %c0_7] : memref<1x64xf32, #tpu.memory_space<vmem>>, vector<1x64xf32>
    %7 = vector.broadcast %6 : vector<1x64xf32> to vector<64x64xf32>
    %8 = arith.addf %5, %7 : vector<64x64xf32>
    %9 = math.tanh %8 : vector<64x64xf32>
    %10 = arith.truncf %9 : vector<64x64xf32> to vector<64x64xbf16>
    %c0_8 = arith.constant 0 : index
    %c0_9 = arith.constant 0 : index
    %11 = vector.load %arg5[%c0_8, %c0_9] : memref<64x64xbf16, #tpu.memory_space<vmem>>, vector<64x64xbf16>
    tpu.vector_store %arg5[%c0_8, %c0_9], %10 {strides = array<i32>} : memref<64x64xbf16, #tpu.memory_space<vmem>>, vector<64x64xbf16>,
    return
  }
  func.func @transform_0(%arg0: i32) -> (i32, i32) {
    %c0_i32 = arith.constant 0 : i32
    %c0_i32_0 = arith.constant 0 : i32
    return %arg0, %c0_i32 : i32, i32
  }
  func.func @transform_1(%arg0: i32) -> (i32, i32) {
    %c0_i32 = arith.constant 0 : i32
    %c0_i32_0 = arith.constant 0 : i32
    return %arg0, %c0_i32 : i32, i32
  }
  func.func @transform_2(%arg0: i32) -> (i32, i32) {
    %c0_i32 = arith.constant 0 : i32
    %c0_i32_0 = arith.constant 0 : i32
    %c0_i32_1 = arith.constant 0 : i32
    return %c0_i32, %c0_i32_0 : i32, i32
  }
  func.func @transform_3(%arg0: i32) -> (i32, i32) {
    %c0_i32 = arith.constant 0 : i32
    %c0_i32_0 = arith.constant 0 : i32
    %c0_i32_1 = arith.constant 0 : i32
    return %c0_i32, %c0_i32_0 : i32, i32
  }
  func.func @transform_4(%arg0: i32) -> (i32, i32) {
    %c0_i32 = arith.constant 0 : i32
    %c0_i32_0 = arith.constant 0 : i32
    return %arg0, %c0_i32 : i32, i32
  }
}

</mosaic_0001>

<llo_original>
// kernel: tpu_custom_call.1
$region0: #{tpu_custom_call.1}
  #allocation0 [shape = 'u32[]', space=smem, size = 0x4, offset = 0x4, fixed_abs, tag = 'smem constant byte address 0x4 - core index']
  #allocation1 [shape = 'u32[144,128]{1,0:T(1,128)}', space=vmem, size = 0x12000, scoped, tag = 'internal scratch']
  %s0 = inlined_call_operand.vmem [shape: bf16[64,64], index: 0, kind: input, shape index: {}]
  %s1 = inlined_call_operand.vmem [shape: bf16[64,9], index: 1, kind: input, shape index: {}]
  %s2 = inlined_call_operand.vmem [shape: bf16[9,64], index: 2, kind: input, shape index: {}]
  %s3 = inlined_call_operand.vmem [shape: f32[1,64], index: 3, kind: input, shape index: {}]
  %s4 = inlined_call_operand.hbm [shape: bf16[64,64], index: 4, kind: output, shape index: {}]
  %s5 = sld [smem:[#allocation0]]
  $region26: #{tpu_custom_call.1} parent=0
    _
  %s7 = ssub.s32 1, %s5
  %s8 = scalar_select 0, %s7, %s5
  $region1: #{tpu_custom_call.1} parent=0
    #allocation2 [shape = 'u8[16384]{0}', space=vmem, size = 0x4000, scoped, tag = 'output window, operand 0, single buffered']
    #allocation3 [shape = 's32[1]{0}', space=sflag, size = 0x4, scoped, tag = 'scoped memory for tpu_custom_call.1']
    %9 = vsyncpa [#allocation3], 0
    // Predicated region
    $region2: #{tpu_custom_call.1} parent=1 // pred_check
      _
    $region3: #{tpu_custom_call.1} parent=1 // pred_check_branch
      %11 = sbr.rel (0) target = $region5
    $region4: #{tpu_custom_call.1} parent=1 // pred_region
      _
    $region5: #{tpu_custom_call.1} parent=1 // pred_fallthru
      _
    // Predicated region
    $region6: #{tpu_custom_call.1} parent=1 // pred_check
      _
    $region7: #{tpu_custom_call.1} parent=1 // pred_check_branch
      %13 = sbr.rel (0) target = $region9
    $region8: #{tpu_custom_call.1} parent=1 // pred_region
      _
    $region9: #{tpu_custom_call.1} parent=1 // pred_fallthru
      _
    // Predicated region
    $region10: #{tpu_custom_call.1} parent=1 // pred_check
      _
    $region11: #{tpu_custom_call.1} parent=1 // pred_check_branch
      %15 = sbr.rel (0) target = $region13
    $region12: #{tpu_custom_call.1} parent=1 // pred_region
      _
    $region13: #{tpu_custom_call.1} parent=1 // pred_fallthru
      _
    // Predicated region
    $region14: #{tpu_custom_call.1} parent=1 // pred_check
      _
    $region15: #{tpu_custom_call.1} parent=1 // pred_check_branch
      %17 = sbr.rel (0) target = $region17
    $region16: #{tpu_custom_call.1} parent=1 // pred_region
      _
    $region17: #{tpu_custom_call.1} parent=1 // pred_fallthru
      _
    %v19 = vld [vmem:[%s1] sm:$0xf]
    %v20 = vld [vmem:[%s1 + $0x4] sm:$0xf]
    %v21 = vld [vmem:[%s1 + $0x8] sm:$0xf]
    %v22 = vld [vmem:[%s1 + $0xc] sm:$0xf]
    %v23 = vld [vmem:[%s1 + $0x10] sm:$0xf]
    %v24 = vld [vmem:[%s1 + $0x14] sm:$0xf]
    %v25 = vld [vmem:[%s1 + $0x18] sm:$0xf]
    %v26 = vld [vmem:[%s1 + $0x1c] sm:$0xf]
    %v27 = vld [vmem:[%s2] sm:$0xf]
    %v28 = vld [vmem:[%s2 + $0x4] sm:$0x1]
    %v37 = vunpack.c.l.b16 %v19
    %v38 = vunpack.c.l.b16 %v20
    %v39 = vunpack.c.l.b16 %v21
    %v40 = vunpack.c.l.b16 %v22
    %v41 = vunpack.c.l.b16 %v23
    %v42 = vunpack.c.l.b16 %v24
    %v43 = vunpack.c.l.b16 %v25
    %v44 = vunpack.c.l.b16 %v26
    %v45 = vpack.c.b16 %v38, %v37
    %v46 = vpack.c.b16 %v40, %v39
    %v47 = vpack.c.b16 %v42, %v41
    %v48 = vpack.c.b16 %v44, %v43
    %v51 = vunpack.c.l.b16 %v27
    %v52 = vunpack.c.l.b16 %v28
    %v53 = vpack.c.b16 %v52, %v51
    %vm54 = vcmask 72704
    %v56 = vsel %vm54, %v45, 0
    %v59 = vsel %vm54, %v46, 0
    %v62 = vsel %vm54, %v47, 0
    %v65 = vsel %vm54, %v48, 0
    %vm67 = vcmask 1043456
    %vm68 = vcmask 1044480
    %v69 = vsel %vm67, 4294967295, 65535
    %v70 = vsel %vm68, %v69, 0
    %v72 = vand.u32 %v53, %v70
    %74 = vmatprep.subr.bf16.mxu0 0
    %75 = vmatpush1.bf16.msra.mxu0 %v72
    %76 = vmatprep.subr.bf16.mxu0 0
    %77 = vmatpush1.bf16.msra.mxu0 0
    %78 = vmatprep.subr.bf16.mxu0 0
    %79 = vmatpush1.bf16.msra.mxu0 0
    %80 = vmatprep.subr.bf16.mxu0 0
    %81 = vmatpush1.bf16.msra.mxu0 0
    %82 = vmatprep.subr.bf16.mxu0 0
    %83 = vmatpush1.bf16.msra.mxu0 0
    %84 = vmatprep.subr.bf16.mxu0 0
    %85 = vmatpush1.bf16.msra.mxu0 0
    %86 = vmatprep.subr.bf16.mxu0 0
    %87 = vmatpush1.bf16.msra.mxu0 0
    %88 = vmatprep.subr.bf16.mxu0 0
    %89 = vmatpush1.bf16.msra.mxu0 0
    %90 = vmatprep.subr.bf16.mxu0 0
    %91 = vmatpush1.bf16.msra.mxu0 0
    %92 = vmatprep.subr.bf16.mxu0 0
    %93 = vmatpush1.bf16.msra.mxu0 0
    %94 = vmatprep.subr.bf16.mxu0 0
    %95 = vmatpush1.bf16.msra.mxu0 0
    %96 = vmatprep.subr.bf16.mxu0 0
    %97 = vmatpush1.bf16.msra.mxu0 0
    %98 = vmatprep.subr.bf16.mxu0 0
    %99 = vmatpush1.bf16.msra.mxu0 0
    %100 = vmatprep.subr.bf16.mxu0 0
    %101 = vmatpush1.bf16.msra.mxu0 0
    %102 = vmatprep.subr.bf16.mxu0 0
    %103 = vmatpush1.bf16.msra.mxu0 0
    %104 = vmatprep.subr.bf16.mxu0 0
    %105 = vmatpush1.bf16.msra.mxu0 0
    %106 = vmatprep.mubr.bf16.mxu0 0
    %107 = vmatmul.mubr.bf16.gmra.mrb[0].mxu0 %v56
    %v108 = vpop.f32.mrb[0].mxu0
    %v109 = vadd.f32 0.0, %v108
    %v110 = vpop.f32.mrb[0].mxu0
    %v111 = vpop.f32.mrb[0].mxu0
    %v112 = vadd.f32 0.0, %v111
    %v113 = vpop.f32.mrb[0].mxu0
    %114 = vmatprep.mubr.bf16.mxu0 0
    %115 = vmatmul.mubr.bf16.gmra.mrb[0].mxu0 %v59
    %v116 = vpop.f32.mrb[0].mxu0
    %v117 = vadd.f32 0.0, %v116
    %v118 = vpop.f32.mrb[0].mxu0
    %v119 = vpop.f32.mrb[0].mxu0
    %v120 = vadd.f32 0.0, %v119
    %v121 = vpop.f32.mrb[0].mxu0
    %122 = vmatprep.mubr.bf16.mxu0 0
    %123 = vmatmul.mubr.bf16.gmra.mrb[0].mxu0 %v62
    %v124 = vpop.f32.mrb[0].mxu0
    %v125 = vadd.f32 0.0, %v124
    %v126 = vpop.f32.mrb[0].mxu0
    %v127 = vpop.f32.mrb[0].mxu0
    %v128 = vadd.f32 0.0, %v127
    %v129 = vpop.f32.mrb[0].mxu0
    %130 = vmatprep.mubr.bf16.mxu0 0
    %131 = vmatmul.mubr.bf16.gmra.mrb[0].mxu0 %v65
    %v132 = vpop.f32.mrb[0].mxu0
    %v133 = vadd.f32 0.0, %v132
    %v134 = vpop.f32.mrb[0].mxu0
    %v135 = vpop.f32.mrb[0].mxu0
    %v136 = vadd.f32 0.0, %v135
    %v137 = vpop.f32.mrb[0].mxu0
    %138 = vdwg.mxu0
    %v139 = vld [vmem:[%s0] sm:$0xf]
    %v140 = vld [vmem:[%s0 + $0x4] sm:$0xf]
    %v141 = vld [vmem:[%s0 + $0x8] sm:$0xf]
    %v142 = vld [vmem:[%s0 + $0xc] sm:$0xf]
    %v143 = vld [vmem:[%s0 + $0x10] sm:$0xf]
    %v144 = vld [vmem:[%s0 + $0x14] sm:$0xf]
    %v145 = vld [vmem:[%s0 + $0x18] sm:$0xf]
    %v146 = vld [vmem:[%s0 + $0x1c] sm:$0xf]
    %v147 = vpack.c.bf16 %v112, %v109
    %v148 = vpack.c.bf16 %v120, %v117
    %v149 = vpack.c.bf16 %v128, %v125
    %v150 = vpack.c.bf16 %v136, %v133
    %v151 = vld [vmem:[%s3] sm:$0x1]
    %v153 = vlaneseq
    %v154 = vshrl.u32 %v153, 7
    %v155 = vsub.s32 0, %v154
    %v156 = vrot.slane %v151, %v155
    %v166 = vunpack.c.l.b16 %v139
    %v167 = vunpack.c.l.b16 %v140
    %v168 = vunpack.c.l.b16 %v141
    %v169 = vunpack.c.l.b16 %v142
    %v170 = vunpack.c.l.b16 %v143
    %v171 = vunpack.c.l.b16 %v144
    %v172 = vunpack.c.l.b16 %v145
    %v173 = vunpack.c.l.b16 %v146
    %v174 = vpack.c.b16 %v167, %v166
    %v175 = vpack.c.b16 %v169, %v168
    %v176 = vpack.c.b16 %v171, %v170
    %v177 = vpack.c.b16 %v173, %v172
    %vm178 = vcmask 523264
    %v180 = vsel %vm178, %v174, 0
    %v183 = vsel %vm178, %v175, 0
    %v186 = vsel %vm178, %v176, 0
    %v189 = vsel %vm178, %v177, 0
    %191 = vmatprep.subr.bf16.mxu0 0
    %192 = vmatpush1.bf16.msra.mxu0 %v147
    %193 = vmatprep.subr.bf16.mxu0 0
    %194 = vmatpush1.bf16.msra.mxu0 %v148
    %195 = vmatprep.subr.bf16.mxu0 0
    %196 = vmatpush1.bf16.msra.mxu0 %v149
    %197 = vmatprep.subr.bf16.mxu0 0
    %198 = vmatpush1.bf16.msra.mxu0 %v150
    %199 = vmatprep.subr.bf16.mxu0 0
    %200 = vmatpush1.bf16.msra.mxu0 0
    %201 = vmatprep.subr.bf16.mxu0 0
    %202 = vmatpush1.bf16.msra.mxu0 0
    %203 = vmatprep.subr.bf16.mxu0 0
    %204 = vmatpush1.bf16.msra.mxu0 0
    %205 = vmatprep.subr.bf16.mxu0 0
    %206 = vmatpush1.bf16.msra.mxu0 0
    %207 = vmatprep.subr.bf16.mxu0 0
    %208 = vmatpush1.bf16.msra.mxu0 0
    %209 = vmatprep.subr.bf16.mxu0 0
    %210 = vmatpush1.bf16.msra.mxu0 0
    %211 = vmatprep.subr.bf16.mxu0 0
    %212 = vmatpush1.bf16.msra.mxu0 0
    %213 = vmatprep.subr.bf16.mxu0 0
    %214 = vmatpush1.bf16.msra.mxu0 0
    %215 = vmatprep.subr.bf16.mxu0 0
    %216 = vmatpush1.bf16.msra.mxu0 0
    %217 = vmatprep.subr.bf16.mxu0 0
    %218 = vmatpush1.bf16.msra.mxu0 0
    %219 = vmatprep.subr.bf16.mxu0 0
    %220 = vmatpush1.bf16.msra.mxu0 0
    %221 = vmatprep.subr.bf16.mxu0 0
    %222 = vmatpush1.bf16.msra.mxu0 0
    %223 = vmatprep.mubr.bf16.mxu0 0
    %224 = vmatmul.mubr.bf16.gmra.mrb[0].mxu0 %v180
    %v225 = vpop.f32.mrb[0].mxu0
    %v226 = vadd.f32 %v156, %v225
    %v227 = vpop.f32.mrb[0].mxu0
    %v228 = vpop.f32.mrb[0].mxu0
    %v229 = vadd.f32 %v156, %v228
    %v230 = vpop.f32.mrb[0].mxu0
    %231 = vmatprep.mubr.bf16.mxu0 0
    %232 = vmatmul.mubr.bf16.gmra.mrb[0].mxu0 %v183
    %v233 = vpop.f32.mrb[0].mxu0
    %v234 = vadd.f32 %v156, %v233
    %v235 = vpop.f32.mrb[0].mxu0
    %v236 = vpop.f32.mrb[0].mxu0
    %v237 = vadd.f32 %v156, %v236
    %v238 = vpop.f32.mrb[0].mxu0
    %239 = vmatprep.mubr.bf16.mxu0 0
    %240 = vmatmul.mubr.bf16.gmra.mrb[0].mxu0 %v186
    %v241 = vpop.f32.mrb[0].mxu0
    %v242 = vadd.f32 %v156, %v241
    %v243 = vpop.f32.mrb[0].mxu0
    %v244 = vpop.f32.mrb[0].mxu0
    %v245 = vadd.f32 %v156, %v244
    %v246 = vpop.f32.mrb[0].mxu0
    %247 = vmatprep.mubr.bf16.mxu0 0
    %248 = vmatmul.mubr.bf16.gmra.mrb[0].mxu0 %v189
    %v249 = vpop.f32.mrb[0].mxu0
    %v250 = vadd.f32 %v156, %v249
    %v251 = vpop.f32.mrb[0].mxu0
    %v252 = vpop.f32.mrb[0].mxu0
    %v253 = vadd.f32 %v156, %v252
    %v254 = vpop.f32.mrb[0].mxu0
    %255 = vdwg.mxu0
    %v256 = vtanh.pop %v226
    %v257 = vtanh.pop %v229
    %v258 = vtanh.pop %v234
    %v259 = vtanh.pop %v237
    %v260 = vtanh.pop %v242
    %v261 = vtanh.pop %v245
    %v262 = vtanh.pop %v250
    %v263 = vtanh.pop %v253
    %v264 = vpack.c.bf16 %v257, %v256
    %v265 = vpack.c.bf16 %v259, %v258
    %v266 = vpack.c.bf16 %v261, %v260
    %v267 = vpack.c.bf16 %v263, %v262
    %v272 = vunpack.c.l.b16 %v264
    %v273 = vunpack.c.h.b16 %v264
    %v274 = vunpack.c.l.b16 %v265
    %v275 = vunpack.c.h.b16 %v265
    %v276 = vunpack.c.l.b16 %v266
    %v277 = vunpack.c.h.b16 %v266
    %v278 = vunpack.c.l.b16 %v267
    %v279 = vunpack.c.h.b16 %v267
    %v280 = vpack.c.b16 %v272, %v272
    %v281 = vpack.c.b16 %v273, %v273
    %v282 = vpack.c.b16 %v274, %v274
    %v283 = vpack.c.b16 %v275, %v275
    %v284 = vpack.c.b16 %v276, %v276
    %v285 = vpack.c.b16 %v277, %v277
    %v286 = vpack.c.b16 %v278, %v278
    %v287 = vpack.c.b16 %v279, %v279
    %vm296 = vcmask 519168
    %297 = vst.msk [vmem:[#allocation2] sm:$0xf] %vm296, %v280
    %298 = vst.msk [vmem:[#allocation2 + $0x4] sm:$0xf] %vm296, %v281
    %299 = vst.msk [vmem:[#allocation2 + $0x8] sm:$0xf] %vm296, %v282
    %300 = vst.msk [vmem:[#allocation2 + $0xc] sm:$0xf] %vm296, %v283
    %301 = vst.msk [vmem:[#allocation2 + $0x10] sm:$0xf] %vm296, %v284
    %302 = vst.msk [vmem:[#allocation2 + $0x14] sm:$0xf] %vm296, %v285
    %303 = vst.msk [vmem:[#allocation2 + $0x18] sm:$0xf] %vm296, %v286
    %304 = vst.msk [vmem:[#allocation2 + $0x1c] sm:$0xf] %vm296, %v287
    // Predicated region
    $region18: #{tpu_custom_call.1} parent=1 // pred_check
      _
    $region19: #{tpu_custom_call.1} parent=1 // pred_check_branch
      %306 = sbr.rel (0) target = $region21
    $region20: #{tpu_custom_call.1} parent=1 // pred_region
      %s308 = ssub.s32 512, 512
      %309 = vsyncadd [#allocation3], %s308
      %s310 = sshll.u32 [#allocation2], 4
      %s311 = int_to_ptr.vmem [resolvable:$true] %s310
      %316 = dma.vmem_to_hbm [thread:$0]  %s311, 512, %s4, [#allocation3], 64, 64, 4
    $region21: #{tpu_custom_call.1} parent=1 // pred_fallthru
      _
    // Predicated region
    $region22: #{tpu_custom_call.1} parent=1 // pred_check
      _
    $region23: #{tpu_custom_call.1} parent=1 // pred_check_branch
      %318 = sbr.rel (0) target = $region25
    $region24: #{tpu_custom_call.1} parent=1 // pred_region
      %319 = dma.done [#allocation3], 512
    $region25: #{tpu_custom_call.1} parent=1 // pred_fallthru
      _
    %320 = vsyncpa [#allocation3], 1

</llo_original>
